<compile_context>
chip_gen: v6e
topology: v6e:2x2x1
jax: 0.10.0
libtpu: 0.0.40
codegen_flags: <defaults>
</compile_context>

<pallas_src>
import math

import jax
import jax.numpy as jnp
from jax.experimental import pallas as pl
from jax.experimental.pallas import tpu as pltpu

H1 = 256
H2 = 128
_LANE = 128
_SUBLANE = 8


def _round_up(n, m):
    return ((n + m - 1) // m) * m


def _critic_kernel(x_ref, w1_ref, b1_ref, w2_ref, b2_ref, w3_ref, b3_ref, o_ref):
    # Fused 3-layer MLP for one batch tile; all weights are fully VMEM-resident.
    x = x_ref[...].astype(jnp.bfloat16)

    # fc1 + ReLU  (bf16 MXU matmul, f32 accumulation)
    h1 = jnp.dot(x, w1_ref[...], preferred_element_type=jnp.float32) + b1_ref[...]
    h1 = jnp.maximum(h1, 0.0)

    # fc2 + ReLU
    h2 = jnp.dot(h1.astype(jnp.bfloat16), w2_ref[...],
                 preferred_element_type=jnp.float32) + b2_ref[...]
    h2 = jnp.maximum(h2, 0.0)

    # fc3: contract H2 of w3 (1, H2) against H2 of h2 (batch_tile, H2)
    # -> (1, batch_tile): batch on the lane axis (lane-dense, unmasked store).
    out_row = jax.lax.dot_general(
        w3_ref[...], h2.astype(jnp.bfloat16),
        dimension_numbers=(((1,), (1,)), ((), ())),
        preferred_element_type=jnp.float32,
    ) + b3_ref[...]
    o_ref[...] = out_row.astype(o_ref.dtype)


def critic_forward(x, params, *, batch_tile=None):
    """x: [B, state_size] float32 -> [B, 1] float32."""
    w1, b1, w2, b2, w3, b3 = params
    B, S = x.shape
    assert w1.shape[0] == S

    # Tile selection:
    #  * B <= 128: single block exactly B rows (block dims == full array dims).
    #  * otherwise: multiple of 128 (required for the lane-dense ragged output
    #    block), sized so the grid has >=2 steps for megacore, capped at 256.
    if batch_tile is None:
        if B <= 128:
            batch_tile = B
        else:
            batch_tile = min(256, _round_up(pl.cdiv(B, 2), _LANE))
    else:
        batch_tile = min(batch_tile, B)

    # VMEM guard for very large state_size: keep the double-buffered x window
    # comfortably under the default scoped-VMEM limit (batch_tile stays a
    # multiple of 128 so ragged blocks remain legal).
    while batch_tile > _LANE and batch_tile % _LANE == 0 and \
            2 * batch_tile * S * 4 > (24 << 20):
        batch_tile //= 2

    grid = (pl.cdiv(B, batch_tile),)

    flops = 2 * B * (S * H1 + H1 * H2 + H2)
    bytes_accessed = (
        x.size * x.dtype.itemsize
        + w1.size * w1.dtype.itemsize
        + w2.size * w2.dtype.itemsize
        + w3.size * w3.dtype.itemsize
        + (b1.size + b2.size + b3.size) * 4
        + B * 4
    )

    out_row = pl.pallas_call(
        _critic_kernel,
        out_shape=jax.ShapeDtypeStruct((1, B), jnp.float32),
        grid_spec=pltpu.PrefetchScalarGridSpec(
            num_scalar_prefetch=0,
            grid=grid,
            in_specs=[
                pl.BlockSpec((batch_tile, S), lambda i: (i, 0)),  # x tile (full K)
                pl.BlockSpec((S, H1), lambda i: (0, 0)),          # w1 (resident)
                pl.BlockSpec((1, H1), lambda i: (0, 0)),          # b1
                pl.BlockSpec((H1, H2), lambda i: (0, 0)),         # w2 (resident)
                pl.BlockSpec((1, H2), lambda i: (0, 0)),          # b2
                pl.BlockSpec((1, H2), lambda i: (0, 0)),          # w3 row
                pl.BlockSpec((1, 1), lambda i: (0, 0)),           # b3
            ],
            out_specs=pl.BlockSpec((1, batch_tile), lambda i: (0, i)),
        ),
        compiler_params=pltpu.CompilerParams(
            dimension_semantics=("parallel",),
        ),
        cost_estimate=pl.CostEstimate(
            flops=flops, transcendentals=0, bytes_accessed=bytes_accessed),
    )(x, w1, b1, w2, b2, w3, b3)

    return out_row[0, :].reshape(B, 1)


def init_critic_params(key, state_size):
    """Deterministic init matching the PyTorch module:
    weights: xavier_uniform_; biases: PyTorch Linear default U(-1/sqrt(fan_in), 1/sqrt(fan_in)).
    Weights stored [in, out] (so y = x @ W + b) and in bf16 (MXU-native); biases f32."""
    ks = jax.random.split(key, 6)

    def xavier(k, fan_in, fan_out):
        bound = math.sqrt(6.0 / (fan_in + fan_out))
        return jax.random.uniform(k, (fan_in, fan_out), jnp.float32, -bound, bound)

    def bias(k, fan_in, fan_out):
        bound = 1.0 / math.sqrt(fan_in)
        return jax.random.uniform(k, (1, fan_out), jnp.float32, -bound, bound)

    w1 = xavier(ks[0], state_size, H1).astype(jnp.bfloat16)
    b1 = bias(ks[1], state_size, H1)
    w2 = xavier(ks[2], H1, H2).astype(jnp.bfloat16)
    b2 = bias(ks[3], H1, H2)
    # fc3 weight stored as a (1, H2) row so fc3 contracts on the lane axis.
    w3 = xavier(ks[4], H2, 1).reshape(1, H2).astype(jnp.bfloat16)
    b3 = bias(ks[5], H2, 1).reshape(1, 1)
    return (w1, b1, w2, b2, w3, b3)


def critic_forward_ref(x, params):
    """Pure-JAX reference with the same bf16-input / f32-accumulate numerics."""
    # TODO(synk): bf16 weights are a deliberate deviation from the f32 PyTorch
    # Linear layers; match within ~1e-2 of a true f32 forward.
    w1, b1, w2, b2, w3, b3 = params
    xb = x.astype(jnp.bfloat16)
    h1 = jnp.maximum(
        jnp.dot(xb, w1, preferred_element_type=jnp.float32) + b1, 0.0)
    h2 = jnp.maximum(
        jnp.dot(h1.astype(jnp.bfloat16), w2, preferred_element_type=jnp.float32) + b2, 0.0)
    out = jnp.dot(h2.astype(jnp.bfloat16), w3.T,
                  preferred_element_type=jnp.float32) + b3
    return out


if __name__ == "__main__":
    key = jax.random.PRNGKey(0)
    k_param, k_x, k_x2 = jax.random.split(key, 3)

    # Primary small-shape check (matches the RL critic's typical tiny batch).
    state_size = 32
    batch = 8
    params = init_critic_params(k_param, state_size)
    x = jax.random.normal(k_x, (batch, state_size), jnp.float32)

    out = jax.block_until_ready(critic_forward(x, params))
    ref = critic_forward_ref(x, params)
    assert out.shape == (batch, 1)
    assert jnp.allclose(out, ref, atol=1e-2, rtol=1e-2), (out, ref)

    # Secondary check: multi-step grid with a ragged last batch block.
    batch2 = 300
    x2 = jax.random.normal(k_x2, (batch2, state_size), jnp.float32)
    out2 = jax.block_until_ready(critic_forward(x2, params))
    ref2 = critic_forward_ref(x2, params)
    assert out2.shape == (batch2, 1)
    assert jnp.allclose(out2, ref2, atol=1e-2, rtol=1e-2)

    print("KERNEL_OK")
</pallas_src>

<mosaic_0001>
module attributes {stable_mosaic.version = 11 : i64} {
  func.func @_critic_kernel(%arg0: i32, %arg1: memref<8x32xf32, #tpu.memory_space<vmem>>, %arg2: memref<32x256xbf16, #tpu.memory_space<vmem>>, %arg3: memref<1x256xf32, #tpu.memory_space<vmem>>, %arg4: memref<256x128xbf16, #tpu.memory_space<vmem>>, %arg5: memref<1x128xf32, #tpu.memory_space<vmem>>, %arg6: memref<1x128xbf16, #tpu.memory_space<vmem>>, %arg7: memref<1x1xf32, #tpu.memory_space<vmem>>, %arg8: memref<1x8xf32, #tpu.memory_space<vmem>>) attributes {dimension_semantics = [#tpu.dimension_semantics<parallel>], iteration_bounds = array<i64: 1>, scalar_prefetch = 0 : i64, scratch_operands = 0 : i64, tpu.core_type = #tpu.core_type<tc>, window_params = [{transform_indices = @transform_0, window_bounds = array<i64: 8, 32>}, {pipeline_mode = #tpu.pipeline_mode<synchronous>, transform_indices = @transform_1, window_bounds = array<i64: 32, 256>}, {pipeline_mode = #tpu.pipeline_mode<synchronous>, transform_indices = @transform_2, window_bounds = array<i64: 1, 256>}, {pipeline_mode = #tpu.pipeline_mode<synchronous>, transform_indices = @transform_3, window_bounds = array<i64: 256, 128>}, {pipeline_mode = #tpu.pipeline_mode<synchronous>, transform_indices = @transform_4, window_bounds = array<i64: 1, 128>}, {pipeline_mode = #tpu.pipeline_mode<synchronous>, transform_indices = @transform_5, window_bounds = array<i64: 1, 128>}, {pipeline_mode = #tpu.pipeline_mode<synchronous>, transform_indices = @transform_6, window_bounds = array<i64: 1, 1>}, {transform_indices = @transform_7, window_bounds = array<i64: 1, 8>}]} {
    %c0 = arith.constant 0 : index
    %c0_0 = arith.constant 0 : index
    %0 = vector.load %arg1[%c0, %c0_0] : memref<8x32xf32, #tpu.memory_space<vmem>>, vector<8x32xf32>
    %1 = arith.truncf %0 : vector<8x32xf32> to vector<8x32xbf16>
    %c0_1 = arith.constant 0 : index
    %c0_2 = arith.constant 0 : index
    %2 = vector.load %arg2[%c0_1, %c0_2] : memref<32x256xbf16, #tpu.memory_space<vmem>>, vector<32x256xbf16>
    %cst = arith.constant dense<0.000000e+00> : vector<8x256xf32>
    %3 = tpu.matmul %1, %2, %cst {dimension_numbers = #tpu.dot_dimension_numbers<[1], [0], [0], [1], [0, 0, 1, 1], [], []>} : vector<8x32xbf16>, vector<32x256xbf16>, vector<8x256xf32> -> vector<8x256xf32>
    %c0_3 = arith.constant 0 : index
    %c0_4 = arith.constant 0 : index
    %4 = vector.load %arg3[%c0_3, %c0_4] : memref<1x256xf32, #tpu.memory_space<vmem>>, vector<1x256xf32>
    %5 = vector.broadcast %4 : vector<1x256xf32> to vector<8x256xf32>
    %6 = arith.addf %3, %5 : vector<8x256xf32>
    %cst_5 = arith.constant 0.000000e+00 : f32
    %7 = vector.broadcast %cst_5 : f32 to vector<8x256xf32>
    %8 = arith.maximumf %6, %7 : vector<8x256xf32>
    %9 = arith.truncf %8 : vector<8x256xf32> to vector<8x256xbf16>
    %c0_6 = arith.constant 0 : index
    %c0_7 = arith.constant 0 : index
    %10 = vector.load %arg4[%c0_6, %c0_7] : memref<256x128xbf16, #tpu.memory_space<vmem>>, vector<256x128xbf16>
    %cst_8 = arith.constant dense<0.000000e+00> : vector<8x128xf32>
    %11 = tpu.matmul %9, %10, %cst_8 {dimension_numbers = #tpu.dot_dimension_numbers<[1], [0], [0], [1], [0, 0, 1, 1], [], []>} : vector<8x256xbf16>, vector<256x128xbf16>, vector<8x128xf32> -> vector<8x128xf32>
    %c0_9 = arith.constant 0 : index
    %c0_10 = arith.constant 0 : index
    %12 = vector.load %arg5[%c0_9, %c0_10] : memref<1x128xf32, #tpu.memory_space<vmem>>, vector<1x128xf32>
    %13 = vector.broadcast %12 : vector<1x128xf32> to vector<8x128xf32>
    %14 = arith.addf %11, %13 : vector<8x128xf32>
    %cst_11 = arith.constant 0.000000e+00 : f32
    %15 = vector.broadcast %cst_11 : f32 to vector<8x128xf32>
    %16 = arith.maximumf %14, %15 : vector<8x128xf32>
    %c0_12 = arith.constant 0 : index
    %c0_13 = arith.constant 0 : index
    %17 = vector.load %arg6[%c0_12, %c0_13] : memref<1x128xbf16, #tpu.memory_space<vmem>>, vector<1x128xbf16>
    %18 = arith.truncf %16 : vector<8x128xf32> to vector<8x128xbf16>
    %cst_14 = arith.constant dense<0.000000e+00> : vector<1x8xf32>
    %19 = tpu.matmul %17, %18, %cst_14 {dimension_numbers = #tpu.dot_dimension_numbers<[1], [1], [0], [0], [0, 0, 1, 0], [], []>} : vector<1x128xbf16>, vector<8x128xbf16>, vector<1x8xf32> -> vector<1x8xf32>
    %c0_15 = arith.constant 0 : index
    %c0_16 = arith.constant 0 : index
    %20 = vector.load %arg7[%c0_15, %c0_16] : memref<1x1xf32, #tpu.memory_space<vmem>>, vector<1x1xf32>
    %21 = vector.broadcast %20 : vector<1x1xf32> to vector<1x8xf32>
    %22 = arith.addf %19, %21 : vector<1x8xf32>
    %c0_17 = arith.constant 0 : index
    %c0_18 = arith.constant 0 : index
    %23 = vector.load %arg8[%c0_17, %c0_18] : memref<1x8xf32, #tpu.memory_space<vmem>>, vector<1x8xf32>
    tpu.vector_store %arg8[%c0_17, %c0_18], %22 {strides = array<i32>} : memref<1x8xf32, #tpu.memory_space<vmem>>, vector<1x8xf32>,
    return
  }
  func.func @transform_0(%arg0: i32) -> (i32, i32) {
    %c0_i32 = arith.constant 0 : i32
    %c0_i32_0 = arith.constant 0 : i32
    return %arg0, %c0_i32 : i32, i32
  }
  func.func @transform_1(%arg0: i32) -> (i32, i32) {
    %c0_i32 = arith.constant 0 : i32
    %c0_i32_0 = arith.constant 0 : i32
    %c0_i32_1 = arith.constant 0 : i32
    return %c0_i32, %c0_i32_0 : i32, i32
  }
  func.func @transform_2(%arg0: i32) -> (i32, i32) {
    %c0_i32 = arith.constant 0 : i32
    %c0_i32_0 = arith.constant 0 : i32
    %c0_i32_1 = arith.constant 0 : i32
    return %c0_i32, %c0_i32_0 : i32, i32
  }
  func.func @transform_3(%arg0: i32) -> (i32, i32) {
    %c0_i32 = arith.constant 0 : i32
    %c0_i32_0 = arith.constant 0 : i32
    %c0_i32_1 = arith.constant 0 : i32
    return %c0_i32, %c0_i32_0 : i32, i32
  }
  func.func @transform_4(%arg0: i32) -> (i32, i32) {
    %c0_i32 = arith.constant 0 : i32
    %c0_i32_0 = arith.constant 0 : i32
    %c0_i32_1 = arith.constant 0 : i32
    return %c0_i32, %c0_i32_0 : i32, i32
  }
  func.func @transform_5(%arg0: i32) -> (i32, i32) {
    %c0_i32 = arith.constant 0 : i32
    %c0_i32_0 = arith.constant 0 : i32
    %c0_i32_1 = arith.constant 0 : i32
    return %c0_i32, %c0_i32_0 : i32, i32
  }
  func.func @transform_6(%arg0: i32) -> (i32, i32) {
    %c0_i32 = arith.constant 0 : i32
    %c0_i32_0 = arith.constant 0 : i32
    %c0_i32_1 = arith.constant 0 : i32
    return %c0_i32, %c0_i32_0 : i32, i32
  }
  func.func @transform_7(%arg0: i32) -> (i32, i32) {
    %c0_i32 = arith.constant 0 : i32
    %c0_i32_0 = arith.constant 0 : i32
    return %c0_i32, %arg0 : i32, i32
  }
}

</mosaic_0001>

<llo_original>
// kernel: tpu_custom_call.1
$region0: #{tpu_custom_call.1}
  #allocation0 [shape = 'u32[]', space=smem, size = 0x4, offset = 0x4, fixed_abs, tag = 'smem constant byte address 0x4 - core index']
  #allocation1 [shape = 'u32[144,128]{1,0:T(1,128)}', space=vmem, size = 0x12000, scoped, tag = 'internal scratch']
  #allocation2 [shape = 'f32[1,1]{1,0:T(1,128)S(1)}', space=vmem, size = 0x200, scoped, tag = 'scoped memory for tpu_custom_call.1']
  %s0 = inlined_call_operand.hbm [shape: f32[8,32], index: 0, kind: input, shape index: {}]
  %s1 = inlined_call_operand.hbm [shape: bf16[32,256], index: 1, kind: input, shape index: {}]
  %s2 = inlined_call_operand.vmem [shape: f32[1,256], index: 2, kind: input, shape index: {}]
  %s3 = inlined_call_operand.hbm [shape: bf16[256,128], index: 3, kind: input, shape index: {}]
  %s4 = inlined_call_operand.vmem [shape: f32[1,128], index: 4, kind: input, shape index: {}]
  %s5 = inlined_call_operand.vmem [shape: bf16[1,128], index: 5, kind: input, shape index: {}]
  %s6 = inlined_call_operand.<no memory space> [shape: f32[1,1], index: 6, kind: input, shape index: {}]
  %s7 = inlined_call_operand.hbm [shape: f32[1,8], index: 7, kind: output, shape index: {}]
  %s8 = sld [smem:[#allocation0]]
  $region50: #{tpu_custom_call.1} parent=0
    _
  %s10 = ssub.s32 1, %s8
  %s11 = scalar_select 0, %s10, %s8
  %v12 = vstv %s6
  %13 = vst [vmem:[#allocation2] sm:$0x1] %v12
  $region1: #{tpu_custom_call.1} parent=0
    #allocation3 [shape = 'u8[4096]{0}', space=vmem, size = 0x1000, scoped, tag = 'input window, operand 0, single buffered']
    #allocation4 [shape = 's32[1]{0}', space=sflag, size = 0x4, scoped, tag = 'scoped memory for tpu_custom_call.1']
    #allocation5 [shape = 's32[1]{0}', space=sflag, size = 0x4, scoped, tag = 'scoped memory for tpu_custom_call.1']
    #allocation6 [shape = 'u8[16384]{0}', space=vmem, size = 0x4000, scoped, tag = 'input window, operand 1, single buffered']
    #allocation7 [shape = 's32[1]{0}', space=sflag, size = 0x4, scoped, tag = 'scoped memory for tpu_custom_call.1']
    #allocation8 [shape = 'u8[65536]{0}', space=vmem, size = 0x10000, scoped, tag = 'input window, operand 3, single buffered']
    #allocation9 [shape = 'u8[512]{0}', space=vmem, size = 0x400, scoped, tag = 'output window, operand 0, single buffered']
    %14 = vsyncpa [#allocation4], 0
    %15 = vsyncpa [#allocation7], 0
    %16 = vsyncpa [#allocation5], 0
    // Predicated region
    $region2: #{tpu_custom_call.1} parent=1 // pred_check
      _
    $region3: #{tpu_custom_call.1} parent=1 // pred_check_branch
      %18 = sbr.rel (0) target = $region5
    $region4: #{tpu_custom_call.1} parent=1 // pred_region
      %s20 = ssub.s32 128, 128
      %21 = vsyncadd [#allocation4], %s20
      %s23 = sshll.u32 [#allocation3], 4
      %s24 = int_to_ptr.vmem [resolvable:$true] %s23
      %26 = dma.hbm_to_vmem [thread:$0]  %s0, 128, %s24, [#allocation4]
    $region5: #{tpu_custom_call.1} parent=1 // pred_fallthru
      _
    // Predicated region
    $region6: #{tpu_custom_call.1} parent=1 // pred_check
      _
    $region7: #{tpu_custom_call.1} parent=1 // pred_check_branch
      %28 = sbr.rel (0) target = $region9
    $region8: #{tpu_custom_call.1} parent=1 // pred_region
      %s30 = ssub.s32 512, 512
      %31 = vsyncadd [#allocation7], %s30
      %s32 = sshll.u32 [#allocation6], 4
      %s33 = int_to_ptr.vmem [resolvable:$true] %s32
      %38 = dma.hbm_to_vmem [thread:$0]  %s1, 512, %s33, [#allocation7], 128, 128, 8
    $region9: #{tpu_custom_call.1} parent=1 // pred_fallthru
      _
    // Predicated region
    $region10: #{tpu_custom_call.1} parent=1 // pred_check
      _
    $region11: #{tpu_custom_call.1} parent=1 // pred_check_branch
      %40 = sbr.rel (0) target = $region13
    $region12: #{tpu_custom_call.1} parent=1 // pred_region
      _
    $region13: #{tpu_custom_call.1} parent=1 // pred_fallthru
      _
    // Predicated region
    $region14: #{tpu_custom_call.1} parent=1 // pred_check
      _
    $region15: #{tpu_custom_call.1} parent=1 // pred_check_branch
      %42 = sbr.rel (0) target = $region17
    $region16: #{tpu_custom_call.1} parent=1 // pred_region
      %s44 = ssub.s32 2048, 2048
      %45 = vsyncadd [#allocation7], %s44
      %s46 = sshll.u32 [#allocation8], 4
      %s47 = int_to_ptr.vmem [resolvable:$true] %s46
      %52 = dma.hbm_to_vmem [thread:$0]  %s3, 2048, %s47, [#allocation7], 64, 64, 4
    $region17: #{tpu_custom_call.1} parent=1 // pred_fallthru
      _
    // Predicated region
    $region18: #{tpu_custom_call.1} parent=1 // pred_check
      _
    $region19: #{tpu_custom_call.1} parent=1 // pred_check_branch
      %54 = sbr.rel (0) target = $region21
    $region20: #{tpu_custom_call.1} parent=1 // pred_region
      _
    $region21: #{tpu_custom_call.1} parent=1 // pred_fallthru
      _
    // Predicated region
    $region22: #{tpu_custom_call.1} parent=1 // pred_check
      _
    $region23: #{tpu_custom_call.1} parent=1 // pred_check_branch
      %56 = sbr.rel (0) target = $region25
    $region24: #{tpu_custom_call.1} parent=1 // pred_region
      _
    $region25: #{tpu_custom_call.1} parent=1 // pred_fallthru
      _
    // Predicated region
    $region26: #{tpu_custom_call.1} parent=1 // pred_check
      _
    $region27: #{tpu_custom_call.1} parent=1 // pred_check_branch
      %58 = sbr.rel (0) target = $region29
    $region28: #{tpu_custom_call.1} parent=1 // pred_region
      _
    $region29: #{tpu_custom_call.1} parent=1 // pred_fallthru
      _
    // Predicated region
    $region30: #{tpu_custom_call.1} parent=1 // pred_check
      _
    $region31: #{tpu_custom_call.1} parent=1 // pred_check_branch
      %60 = sbr.rel (0) target = $region33
    $region32: #{tpu_custom_call.1} parent=1 // pred_region
      %61 = dma.done [#allocation4], 128
    $region33: #{tpu_custom_call.1} parent=1 // pred_fallthru
      _
    // Predicated region
    $region34: #{tpu_custom_call.1} parent=1 // pred_check
      _
    $region35: #{tpu_custom_call.1} parent=1 // pred_check_branch
      %63 = sbr.rel (0) target = $region37
    $region36: #{tpu_custom_call.1} parent=1 // pred_region
      %64 = dma.done [#allocation7], 512
    $region37: #{tpu_custom_call.1} parent=1 // pred_fallthru
      _
    // Predicated region
    $region38: #{tpu_custom_call.1} parent=1 // pred_check
      _
    $region39: #{tpu_custom_call.1} parent=1 // pred_check_branch
      %66 = sbr.rel (0) target = $region41
    $region40: #{tpu_custom_call.1} parent=1 // pred_region
      %67 = dma.done [#allocation7], 2048
    $region41: #{tpu_custom_call.1} parent=1 // pred_fallthru
      _
    %v69 = vld [vmem:[#allocation3] sm:$0xff]
    %v70 = vpack.c.bf16 %v69, %v69
    %v71 = vld [vmem:[#allocation6] sm:$0xff]
    %v72 = vld [vmem:[#allocation6 + $0x8] sm:$0xff]
    %v73 = vld [vmem:[#allocation6 + $0x10] sm:$0xff]
    %v74 = vld [vmem:[#allocation6 + $0x18] sm:$0xff]
    %v75 = vld [vmem:[%s2] sm:$0x3]
    %v77 = vlaneseq
    %v78 = vshrl.u32 %v77, 7
    %v79 = vsub.s32 0, %v78
    %v80 = vrot.slane %v75, %v79
    %v81 = vlaneseq
    %v82 = vshrl.u32 %v81, 7
    %v83 = vsub.s32 1, %v82
    %v84 = vrot.slane %v75, %v83
    %v91 = vunpack.c.l.b16 %v71
    %v92 = vunpack.c.h.b16 %v71
    %v93 = vunpack.c.l.b16 %v72
    %v94 = vunpack.c.h.b16 %v72
    %v95 = vunpack.c.l.b16 %v73
    %v96 = vunpack.c.h.b16 %v73
    %v97 = vunpack.c.l.b16 %v74
    %v98 = vunpack.c.h.b16 %v74
    %v99 = vpack.c.b16 %v93, %v91
    %v100 = vpack.c.b16 %v94, %v92
    %v101 = vpack.c.b16 %v97, %v95
    %v102 = vpack.c.b16 %v98, %v96
    %vm107 = vcmask 261120
    %v109 = vsel %vm107, %v70, 0
    %111 = vmatprep.subr.bf16.mxu0 0
    %112 = vmatpush1.bf16.msra.mxu0 0
    %113 = vmatprep.subr.bf16.mxu0 0
    %114 = vmatpush1.bf16.msra.mxu0 0
    %115 = vmatprep.subr.bf16.mxu0 0
    %116 = vmatpush1.bf16.msra.mxu0 0
    %117 = vmatprep.subr.bf16.mxu0 0
    %118 = vmatpush1.bf16.msra.mxu0 0
    %119 = vmatprep.subr.bf16.mxu0 0
    %120 = vmatpush1.bf16.msra.mxu0 0
    %121 = vmatprep.subr.bf16.mxu0 0
    %122 = vmatpush1.bf16.msra.mxu0 0
    %123 = vmatprep.subr.bf16.mxu0 %v102
    %124 = vmatpush1.bf16.msra.mxu0 %v101
    %125 = vmatprep.subr.bf16.mxu0 %v100
    %126 = vmatpush1.bf16.msra.mxu0 %v99
    %127 = vmatprep.subr.bf16.mxu0 0
    %128 = vmatpush2.bf16.msra.mxu0 0
    %129 = vmatprep.subr.bf16.mxu0 0
    %130 = vmatpush2.bf16.msra.mxu0 0
    %131 = vmatprep.subr.bf16.mxu0 0
    %132 = vmatpush2.bf16.msra.mxu0 0
    %133 = vmatprep.subr.bf16.mxu0 0
    %134 = vmatpush2.bf16.msra.mxu0 0
    %135 = vmatprep.subr.bf16.mxu0 0
    %136 = vmatpush2.bf16.msra.mxu0 0
    %137 = vmatprep.subr.bf16.mxu0 0
    %138 = vmatpush2.bf16.msra.mxu0 0
    %139 = vmatprep.subr.bf16.mxu0 0
    %140 = vmatpush2.bf16.msra.mxu0 0
    %141 = vmatprep.subr.bf16.mxu0 0
    %142 = vmatpush2.bf16.msra.mxu0 0
    %143 = vmatprep.mubr.bf16.mxu0 0
    %144 = vmatmul.mubr.bf16.gmra.mxu0 %v109
    %v145 = vpop.f32.mrf.mxu0
    %v146 = vadd.f32 %v80, %v145
    %v147 = vpop.f32.mrf.mxu0
    %v148 = vadd.f32 %v84, %v147
    %v149 = vpop.f32.mrf.mxu0
    %v150 = vpop.f32.mrf.mxu0
    %151 = vdwg.mxu0
    %v152 = vmax.f32 %v146, 0.0
    %v153 = vmax.f32 %v148, 0.0
    %v154 = vpack.c.bf16 %v152, %v152
    %v155 = vpack.c.bf16 %v153, %v153
    %v156 = vld [vmem:[#allocation8] sm:$0xf]
    %v157 = vld [vmem:[#allocation8 + $0x4] sm:$0xf]
    %v158 = vld [vmem:[#allocation8 + $0x8] sm:$0xf]
    %v159 = vld [vmem:[#allocation8 + $0xc] sm:$0xf]
    %v160 = vld [vmem:[#allocation8 + $0x10] sm:$0xf]
    %v161 = vld [vmem:[#allocation8 + $0x14] sm:$0xf]
    %v162 = vld [vmem:[#allocation8 + $0x18] sm:$0xf]
    %v163 = vld [vmem:[#allocation8 + $0x1c] sm:$0xf]
    %v164 = vld [vmem:[#allocation8 + $0x20] sm:$0xf]
    %v165 = vld [vmem:[#allocation8 + $0x24] sm:$0xf]
    %v166 = vld [vmem:[#allocation8 + $0x28] sm:$0xf]
    %v167 = vld [vmem:[#allocation8 + $0x2c] sm:$0xf]
    %v168 = vld [vmem:[#allocation8 + $0x30] sm:$0xf]
    %v169 = vld [vmem:[#allocation8 + $0x34] sm:$0xf]
    %v170 = vld [vmem:[#allocation8 + $0x38] sm:$0xf]
    %v171 = vld [vmem:[#allocation8 + $0x3c] sm:$0xf]
    %v172 = vld [vmem:[#allocation8 + $0x40] sm:$0xf]
    %v173 = vld [vmem:[#allocation8 + $0x44] sm:$0xf]
    %v174 = vld [vmem:[#allocation8 + $0x48] sm:$0xf]
    %v175 = vld [vmem:[#allocation8 + $0x4c] sm:$0xf]
    %v176 = vld [vmem:[#allocation8 + $0x50] sm:$0xf]
    %v177 = vld [vmem:[#allocation8 + $0x54] sm:$0xf]
    %v178 = vld [vmem:[#allocation8 + $0x58] sm:$0xf]
    %v179 = vld [vmem:[#allocation8 + $0x5c] sm:$0xf]
    %v180 = vld [vmem:[#allocation8 + $0x60] sm:$0xf]
    %v181 = vld [vmem:[#allocation8 + $0x64] sm:$0xf]
    %v182 = vld [vmem:[#allocation8 + $0x68] sm:$0xf]
    %v183 = vld [vmem:[#allocation8 + $0x6c] sm:$0xf]
    %v184 = vld [vmem:[#allocation8 + $0x70] sm:$0xf]
    %v185 = vld [vmem:[#allocation8 + $0x74] sm:$0xf]
    %v186 = vld [vmem:[#allocation8 + $0x78] sm:$0xf]
    %v187 = vld [vmem:[#allocation8 + $0x7c] sm:$0xf]
    %v188 = vld [vmem:[%s4] sm:$0x1]
    %v190 = vlaneseq
    %v191 = vshrl.u32 %v190, 7
    %v192 = vsub.s32 0, %v191
    %v193 = vrot.slane %v188, %v192
    %v227 = vunpack.c.l.b16 %v156
    %v228 = vunpack.c.l.b16 %v157
    %v229 = vunpack.c.l.b16 %v158
    %v230 = vunpack.c.l.b16 %v159
    %v231 = vunpack.c.l.b16 %v160
    %v232 = vunpack.c.l.b16 %v161
    %v233 = vunpack.c.l.b16 %v162
    %v234 = vunpack.c.l.b16 %v163
    %v235 = vunpack.c.l.b16 %v164
    %v236 = vunpack.c.l.b16 %v165
    %v237 = vunpack.c.l.b16 %v166
    %v238 = vunpack.c.l.b16 %v167
    %v239 = vunpack.c.l.b16 %v168
    %v240 = vunpack.c.l.b16 %v169
    %v241 = vunpack.c.l.b16 %v170
    %v242 = vunpack.c.l.b16 %v171
    %v243 = vunpack.c.l.b16 %v172
    %v244 = vunpack.c.l.b16 %v173
    %v245 = vunpack.c.l.b16 %v174
    %v246 = vunpack.c.l.b16 %v175
    %v247 = vunpack.c.l.b16 %v176
    %v248 = vunpack.c.l.b16 %v177
    %v249 = vunpack.c.l.b16 %v178
    %v250 = vunpack.c.l.b16 %v179
    %v251 = vunpack.c.l.b16 %v180
    %v252 = vunpack.c.l.b16 %v181
    %v253 = vunpack.c.l.b16 %v182
    %v254 = vunpack.c.l.b16 %v183
    %v255 = vunpack.c.l.b16 %v184
    %v256 = vunpack.c.l.b16 %v185
    %v257 = vunpack.c.l.b16 %v186
    %v258 = vunpack.c.l.b16 %v187
    %v259 = vpack.c.b16 %v228, %v227
    %v260 = vpack.c.b16 %v230, %v229
    %v261 = vpack.c.b16 %v232, %v231
    %v262 = vpack.c.b16 %v234, %v233
    %v263 = vpack.c.b16 %v236, %v235
    %v264 = vpack.c.b16 %v238, %v237
    %v265 = vpack.c.b16 %v240, %v239
    %v266 = vpack.c.b16 %v242, %v241
    %v267 = vpack.c.b16 %v244, %v243
    %v268 = vpack.c.b16 %v246, %v245
    %v269 = vpack.c.b16 %v248, %v247
    %v270 = vpack.c.b16 %v250, %v249
    %v271 = vpack.c.b16 %v252, %v251
    %v272 = vpack.c.b16 %v254, %v253
    %v273 = vpack.c.b16 %v256, %v255
    %v274 = vpack.c.b16 %v258, %v257
    %291 = vmatprep.subr.bf16.mxu0 0
    %292 = vmatpush1.bf16.msra.mxu0 %v266
    %293 = vmatprep.subr.bf16.mxu0 0
    %294 = vmatpush1.bf16.msra.mxu0 %v265
    %295 = vmatprep.subr.bf16.mxu0 0
    %296 = vmatpush1.bf16.msra.mxu0 %v264
    %297 = vmatprep.subr.bf16.mxu0 0
    %298 = vmatpush1.bf16.msra.mxu0 %v263
    %299 = vmatprep.subr.bf16.mxu0 0
    %300 = vmatpush1.bf16.msra.mxu0 %v262
    %301 = vmatprep.subr.bf16.mxu0 0
    %302 = vmatpush1.bf16.msra.mxu0 %v261
    %303 = vmatprep.subr.bf16.mxu0 0
    %304 = vmatpush1.bf16.msra.mxu0 %v260
    %305 = vmatprep.subr.bf16.mxu0 0
    %306 = vmatpush1.bf16.msra.mxu0 %v259
    %307 = vmatprep.subr.bf16.mxu0 0
    %308 = vmatpush2.bf16.msra.mxu0 %v274
    %309 = vmatprep.subr.bf16.mxu0 0
    %310 = vmatpush2.bf16.msra.mxu0 %v273
    %311 = vmatprep.subr.bf16.mxu0 0
    %312 = vmatpush2.bf16.msra.mxu0 %v272
    %313 = vmatprep.subr.bf16.mxu0 0
    %314 = vmatpush2.bf16.msra.mxu0 %v271
    %315 = vmatprep.subr.bf16.mxu0 0
    %316 = vmatpush2.bf16.msra.mxu0 %v270
    %317 = vmatprep.subr.bf16.mxu0 0
    %318 = vmatpush2.bf16.msra.mxu0 %v269
    %319 = vmatprep.subr.bf16.mxu0 0
    %320 = vmatpush2.bf16.msra.mxu0 %v268
    %321 = vmatprep.subr.bf16.mxu0 0
    %322 = vmatpush2.bf16.msra.mxu0 %v267
    %323 = vmatprep.mubr.bf16.mxu0 %v155
    %324 = vmatmul.mubr.bf16.gmra.mxu0 %v154
    %v325 = vpop.f32.mrf.mxu0
    %v326 = vadd.f32 %v193, %v325
    %v327 = vpop.f32.mrf.mxu0
    %v328 = vpop.f32.mrf.mxu0
    %v329 = vpop.f32.mrf.mxu0
    %330 = vdwg.mxu0
    %v331 = vmax.f32 %v326, 0.0
    %v332 = vld [vmem:[%s5] sm:$0x1]
    %v333 = vpack.c.bf16 %v331, %v331
    %v334 = vld [vmem:[#allocation2] sm:$0x1]
    %336 = vset.pattern.permute.xlu0 0
    %337 = vperm.xlu0 %336, %v334
    %v338 = vpop.permute.xlu0 %337
    %v340 = vlaneseq
    %v341 = vshrl.u32 %v340, 7
    %v342 = vsub.s32 0, %v341
    %v343 = vrot.slane %v338, %v342
    %344 = vmatprep.subr.bf16.mxu0 0
    %345 = vmatpush1.bf16.xpose.msra.mxu0 0
    %346 = vmatprep.subr.bf16.mxu0 0
    %347 = vmatpush1.bf16.xpose.msra.mxu0 0
    %348 = vmatprep.subr.bf16.mxu0 0
    %349 = vmatpush1.bf16.xpose.msra.mxu0 0
    %350 = vmatprep.subr.bf16.mxu0 0
    %351 = vmatpush1.bf16.xpose.msra.mxu0 0
    %352 = vmatprep.subr.bf16.mxu0 0
    %353 = vmatpush1.bf16.xpose.msra.mxu0 0
    %354 = vmatprep.subr.bf16.mxu0 0
    %355 = vmatpush1.bf16.xpose.msra.mxu0 0
    %356 = vmatprep.subr.bf16.mxu0 0
    %357 = vmatpush1.bf16.xpose.msra.mxu0 0
    %358 = vmatprep.subr.bf16.mxu0 0
    %359 = vmatpush1.bf16.xpose.msra.mxu0 %v333
    %360 = vmatprep.subr.bf16.mxu0 0
    %361 = vmatpush2.bf16.xpose.msra.mxu0 0
    %362 = vmatprep.subr.bf16.mxu0 0
    %363 = vmatpush2.bf16.xpose.msra.mxu0 0
    %364 = vmatprep.subr.bf16.mxu0 0
    %365 = vmatpush2.bf16.xpose.msra.mxu0 0
    %366 = vmatprep.subr.bf16.mxu0 0
    %367 = vmatpush2.bf16.xpose.msra.mxu0 0
    %368 = vmatprep.subr.bf16.mxu0 0
    %369 = vmatpush2.bf16.xpose.msra.mxu0 0
    %370 = vmatprep.subr.bf16.mxu0 0
    %371 = vmatpush2.bf16.xpose.msra.mxu0 0
    %372 = vmatprep.subr.bf16.mxu0 0
    %373 = vmatpush2.bf16.xpose.msra.mxu0 0
    %374 = vmatprep.subr.bf16.mxu0 0
    %375 = vmatpush2.bf16.xpose.msra.mxu0 0
    %376 = vmatprep.mubr.bf16.mxu0 0
    %377 = vmatmul.mubr.bf16.gmra.mxu0 %v332
    %v378 = vpop.f32.mrf.mxu0
    %v379 = vadd.f32 %v343, %v378
    %v380 = vpop.f32.mrf.mxu0
    %v381 = vpop.f32.mrf.mxu0
    %v382 = vpop.f32.mrf.mxu0
    %383 = vdwg.mxu0
    %vm384 = vcmask 57344
    %385 = vst.msk [vmem:[#allocation9] sm:$0x1] %vm384, %v379
    // Predicated region
    $region42: #{tpu_custom_call.1} parent=1 // pred_check
      _
    $region43: #{tpu_custom_call.1} parent=1 // pred_check_branch
      %387 = sbr.rel (0) target = $region45
    $region44: #{tpu_custom_call.1} parent=1 // pred_region
      %s389 = ssub.s32 16, 16
      %390 = vsyncadd [#allocation5], %s389
      %s392 = sshll.u32 [#allocation9], 4
      %s393 = int_to_ptr.vmem [resolvable:$true] %s392
      %395 = dma.vmem_to_hbm [thread:$0]  %s393, 16, %s7, [#allocation5]
    $region45: #{tpu_custom_call.1} parent=1 // pred_fallthru
      _
    // Predicated region
    $region46: #{tpu_custom_call.1} parent=1 // pred_check
      _
    $region47: #{tpu_custom_call.1} parent=1 // pred_check_branch
      %397 = sbr.rel (0) target = $region49
    $region48: #{tpu_custom_call.1} parent=1 // pred_region
      %398 = dma.done [#allocation5], 16
    $region49: #{tpu_custom_call.1} parent=1 // pred_fallthru
      _
    %399 = vsyncpa [#allocation4], 1
    %400 = vsyncpa [#allocation7], 1
    %401 = vsyncpa [#allocation5], 1

</llo_original>
